<compile_context>
chip_gen: v7x
topology: tpu7x:2x2x1
jax: 0.10.0
libtpu: 0.0.40
codegen_flags: <defaults>
</compile_context>

<pallas_src>
import math
import functools

import numpy as np
import jax
import jax.numpy as jnp
from jax.experimental import pallas as pl
from jax.experimental.pallas import tpu as pltpu

EPS = 1e-5


def _gps_kernel(x_ref, mask_ref,
                wqkv_ref, bqkv_ref, wo_ref,
                s2_ref, t2_ref,
                w1_ref, b1_ref, w2_ref,
                s3_ref, t3_ref,
                o_ref,
                *, heads: int, head_dim_p: int):
    Cp = heads * head_dim_p
    x = x_ref[...]                                   # [rows, Cp] f32 (lane-dense)
    xb = x.astype(jnp.bfloat16)

    # ---- fused QKV projection (1/sqrt(D) pre-folded into the Q columns/bias) ----
    qkv = jnp.dot(xb, wqkv_ref[...],
                  preferred_element_type=jnp.float32) + bqkv_ref[...]      # [rows, 3Cp] f32
    qkvb = qkv.astype(jnp.bfloat16)                  # one bf16 cast for all heads

    mask = mask_ref[...]                             # [rows, rows] additive: 0 / -1e30
    wo = wo_ref[...]                                 # [Cp, Cp] bf16

    # ---- block-diagonal multi-head self attention over the whole tile ----
    attn = jnp.zeros(x.shape, jnp.float32)
    for h in range(heads):                           # static unroll over heads only
        c0 = h * head_dim_p
        qh = qkvb[:, c0:c0 + head_dim_p]
        kh = qkvb[:, Cp + c0:Cp + c0 + head_dim_p]
        vh = qkvb[:, 2 * Cp + c0:2 * Cp + c0 + head_dim_p]
        s = jnp.dot(qh, kh.T, preferred_element_type=jnp.float32) + mask   # mask BEFORE max
        s = s - jnp.max(s, axis=-1, keepdims=True)
        p = jnp.exp(s)
        p = p * pl.reciprocal(jnp.sum(p, axis=-1, keepdims=True), approx=True)
        hv = jnp.dot(p.astype(jnp.bfloat16), vh,
                     preferred_element_type=jnp.float32)                   # [rows, Dp] f32
        # fold the output projection per head -> no lane-axis head concat
        attn = attn + jnp.dot(hv.astype(jnp.bfloat16), wo[c0:c0 + head_dim_p, :],
                              preferred_element_type=jnp.float32)

    # ---- dropout(p=0) + residual + norm2 (BN eval; bo folded into t2) ----
    h2 = (attn + x) * s2_ref[...] + t2_ref[...]

    # conv branch is None -> out = sum(hs) = h2
    # ---- MLP: Linear(C,2C) -> ReLU -> Dropout(0) -> Linear(2C,C) -> Dropout(0) ----
    m = jnp.dot(h2.astype(jnp.bfloat16), w1_ref[...],
                preferred_element_type=jnp.float32) + b1_ref[...]
    m = jnp.maximum(m, 0.0)
    m = jnp.dot(m.astype(jnp.bfloat16), w2_ref[...],
                preferred_element_type=jnp.float32)                        # b2 folded into t3

    # ---- residual + norm3 ----
    o_ref[...] = (h2 + m) * s3_ref[...] + t3_ref[...]


def _round_up(v, m):
    return -(-v // m) * m


def _choose_tiling(num_graphs, nodes, target_rows):
    """Pick graphs-per-block and grid length (zero-padded graphs fill the last tile)."""
    gpb = max(1, min(num_graphs, pl.cdiv(target_rows, nodes)))
    grid_len = pl.cdiv(num_graphs, gpb)
    # v7x: split one oversized block in two only when each half keeps >=128 rows, so
    # both TensorCores get work; otherwise one big tile wins (v6e has a single core).
    if grid_len == 1 and (gpb // 2) * nodes >= 128:
        gpb = pl.cdiv(gpb, 2)
        grid_len = pl.cdiv(num_graphs, gpb)
    if grid_len > 1:
        # keep tiles sublane-aligned and the grid even so v7x's two cores stay balanced
        while (gpb * nodes) % 8 != 0:
            gpb += 1
        grid_len = pl.cdiv(num_graphs, gpb)
        if grid_len > 1 and grid_len % 2 == 1:
            grid_len += 1
    return gpb, grid_len


def gps_conv_forward(x_flat, prep, *, heads, nodes, target_rows=256):
    """x_flat: [B*N, C] f32 node features (equal-size graphs). Returns [B*N, C] f32."""
    R, C = x_flat.shape
    assert R % nodes == 0, "equal-size graphs only"
    B = R // nodes
    Cp = prep["meta"]["Cp"]
    Dp = prep["meta"]["Dp"]
    Hp = prep["meta"]["Hp"]

    gpb, grid_len = _choose_tiling(B, nodes, target_rows)
    rows = gpb * nodes
    R_pad = grid_len * rows

    # lane-dense slab: channels padded to Cp (multiple of 128); padded graphs are zeros
    x_pad = jnp.pad(x_flat, ((0, R_pad - R), (0, Cp - C)))

    # block-diagonal additive attention mask for one tile (built once, wrapper-side)
    gid = np.arange(rows) // nodes
    attn_mask = jnp.asarray(
        np.where(gid[:, None] == gid[None, :], 0.0, -1e30).astype(np.float32))

    kernel = functools.partial(_gps_kernel, heads=heads, head_dim_p=Dp)

    weight_args = (prep["wqkv"], prep["bqkv"], prep["wo"],
                   prep["s2"], prep["t2"],
                   prep["w1"], prep["b1"], prep["w2"],
                   prep["s3"], prep["t3"])

    in_specs = [pl.BlockSpec((rows, Cp), lambda i: (i, 0)),
                pl.BlockSpec((rows, rows), lambda i: (0, 0))]
    # Weights/biases: whole-array blocks with constant index maps (fetched once).
    # (pl.Buffered(1) would also single-buffer them on v7x; left default for portability.)
    in_specs += [pl.BlockSpec(w.shape, lambda i: (0, 0)) for w in weight_args]
    out_specs = pl.BlockSpec((rows, Cp), lambda i: (i, 0))   # lane-dense stores (Cp % 128 == 0)

    flops = int(R_pad * Cp * (6 * Cp + 2 * Cp + 4 * Hp) + 4 * R_pad * rows * Cp)
    transcendentals = int(heads * R_pad * (rows + 1))
    weight_bytes = sum(int(w.size) * int(w.dtype.itemsize) for w in weight_args)
    io_bytes = int(2 * R_pad * Cp * 4 + rows * rows * 4 + weight_bytes)

    # VMEM budget from actual tile + weight footprint (x/out double-buffered by the
    # pipeline, weights resident), with headroom for intermediates; capped below v7x's 64 MiB.
    tile_bytes = 2 * (2 * rows * Cp * 4) + 2 * rows * rows * 4
    vmem_limit = int(min(60 * 2 ** 20, max(8 * 2 ** 20, 4 * (tile_bytes + 2 * weight_bytes))))

    out = pl.pallas_call(
        kernel,
        out_shape=jax.ShapeDtypeStruct((R_pad, Cp), jnp.float32),
        grid=(grid_len,),
        in_specs=in_specs,
        out_specs=out_specs,
        compiler_params=pltpu.CompilerParams(
            dimension_semantics=("parallel",),
            vmem_limit_bytes=vmem_limit,
        ),
        cost_estimate=pl.CostEstimate(flops=flops,
                                      transcendentals=transcendentals,
                                      bytes_accessed=io_bytes),
    )(x_pad, attn_mask, *weight_args)
    return out[:R, :C]


def make_params(key, channels, heads):
    """Raw f32 params in PyTorch layout (pre-transposed so kernel does x @ W)."""
    C = channels
    ks = jax.random.split(key, 12)
    u = lambda k, shape, s=0.1: jax.random.uniform(k, shape, jnp.float32, -s, s)
    params = {
        "wq": u(ks[0], (C, C)), "bq": u(ks[1], (1, C)),
        "wk": u(ks[2], (C, C)), "bk": u(ks[3], (1, C)),
        "wv": u(ks[4], (C, C)), "bv": u(ks[5], (1, C)),
        "wo": u(ks[6], (C, C)), "bo": u(ks[7], (1, C)),
        "w1": u(ks[8], (C, 2 * C)), "bb1": u(ks[9], (1, 2 * C)),
        "w2": u(ks[10], (2 * C, C)), "bb2": u(ks[11], (1, C)),
    }
    k2 = jax.random.split(key, 9)
    params.update({
        "g2": 1.0 + u(k2[0], (1, C)), "be2": u(k2[1], (1, C)),
        "rm2": u(k2[2], (1, C)), "rv2": 1.0 + jnp.abs(u(k2[3], (1, C))),
        "g3": 1.0 + u(k2[4], (1, C)), "be3": u(k2[5], (1, C)),
        "rm3": u(k2[6], (1, C)), "rv3": 1.0 + jnp.abs(u(k2[7], (1, C))),
    })
    return params


def prepare_params(params, *, heads, lane=128):
    """Fold 1/sqrt(D) into Q, fuse QKV, fold BN to scale/shift (absorbing bo, b2),
    zero-pad channels to a lane-dense multiple of 128, cast matmul weights to bf16."""
    C = params["wq"].shape[0]
    assert C % heads == 0
    D = C // heads
    scale = 1.0 / math.sqrt(D)

    Cp = _round_up(C, lane)
    while Cp % heads:
        Cp += lane
    Dp = Cp // heads
    Hp = _round_up(2 * C, lane)

    def pad_in_cols(w, b):   # Q/K/V weight [C,C] & bias [1,C]: per-head column pad
        w = jnp.pad(w.reshape(C, heads, D), ((0, Cp - C), (0, 0), (0, Dp - D)))
        b = jnp.pad(b.reshape(1, heads, D), ((0, 0), (0, 0), (0, Dp - D)))
        return w.reshape(Cp, Cp), b.reshape(1, Cp)

    wq, bq = pad_in_cols(params["wq"] * scale, params["bq"] * scale)
    wk, bk = pad_in_cols(params["wk"], params["bk"])
    wv, bv = pad_in_cols(params["wv"], params["bv"])
    wqkv = jnp.concatenate([wq, wk, wv], axis=1)        # [Cp, 3*Cp]
    bqkv = jnp.concatenate([bq, bk, bv], axis=1)        # [1, 3*Cp]

    wo = jnp.pad(params["wo"].reshape(heads, D, C),
                 ((0, 0), (0, Dp - D), (0, Cp - C))).reshape(Cp, Cp)
    bo = jnp.pad(params["bo"], ((0, 0), (0, Cp - C)))

    def bn_affine(g, be, rm, rv):
        s = g * jax.lax.rsqrt(rv + EPS)
        t = be - rm * s
        return (jnp.pad(s, ((0, 0), (0, Cp - C))),
                jnp.pad(t, ((0, 0), (0, Cp - C))))

    s2, t2 = bn_affine(params["g2"], params["be2"], params["rm2"], params["rv2"])
    s3, t3 = bn_affine(params["g3"], params["be3"], params["rm3"], params["rv3"])

    w1 = jnp.pad(params["w1"], ((0, Cp - C), (0, Hp - 2 * C)))
    b1 = jnp.pad(params["bb1"], ((0, 0), (0, Hp - 2 * C)))
    w2 = jnp.pad(params["w2"], ((0, Hp - 2 * C), (0, Cp - C)))
    b2 = jnp.pad(params["bb2"], ((0, 0), (0, Cp - C)))

    # fold attention out-proj bias and second MLP bias into the BN shifts (exact algebra)
    t2 = t2 + bo * s2
    t3 = t3 + b2 * s3

    return {
        "wqkv": wqkv.astype(jnp.bfloat16), "bqkv": bqkv,
        "wo": wo.astype(jnp.bfloat16),
        "s2": s2, "t2": t2,
        "w1": w1.astype(jnp.bfloat16), "b1": b1,
        "w2": w2.astype(jnp.bfloat16),
        "s3": s3, "t3": t3,
        "meta": {"C": C, "Cp": Cp, "D": D, "Dp": Dp, "Hp": Hp},
    }


def reference_forward(x_flat, prep, *, heads, nodes):
    """Pure-JAX reference with matching padding/folding & bf16 matmul boundaries."""
    R, C = x_flat.shape
    Cp, Dp = prep["meta"]["Cp"], prep["meta"]["Dp"]
    B = R // nodes
    x = jnp.pad(x_flat, ((0, 0), (0, Cp - C)))
    xb = x.astype(jnp.bfloat16)
    qkv = jnp.dot(xb, prep["wqkv"], preferred_element_type=jnp.float32) + prep["bqkv"]
    q = qkv[:, :Cp].reshape(B, nodes, heads, Dp)
    k = qkv[:, Cp:2 * Cp].reshape(B, nodes, heads, Dp)
    v = qkv[:, 2 * Cp:].reshape(B, nodes, heads, Dp)
    s = jnp.einsum("bnhd,bmhd->bhnm", q.astype(jnp.bfloat16), k.astype(jnp.bfloat16),
                   preferred_element_type=jnp.float32)
    p = jax.nn.softmax(s, axis=-1)
    a = jnp.einsum("bhnm,bmhd->bnhd", p.astype(jnp.bfloat16), v.astype(jnp.bfloat16),
                   preferred_element_type=jnp.float32).reshape(R, Cp)
    a = jnp.dot(a.astype(jnp.bfloat16), prep["wo"], preferred_element_type=jnp.float32)
    h2 = (a + x) * prep["s2"] + prep["t2"]
    m = jnp.maximum(jnp.dot(h2.astype(jnp.bfloat16), prep["w1"],
                            preferred_element_type=jnp.float32) + prep["b1"], 0.0)
    m = jnp.dot(m.astype(jnp.bfloat16), prep["w2"], preferred_element_type=jnp.float32)
    out = (h2 + m) * prep["s3"] + prep["t3"]
    return out[:, :C]


if __name__ == "__main__":
    # 2 graphs x 8 nodes, channels=32, heads=2
    B, N, C, HEADS = 2, 8, 32, 2
    key = jax.random.PRNGKey(0)
    kx, kp = jax.random.split(key)

    # flat node features [num_nodes, C] + equal-sized batch vector, as in PyG
    x_flat = jax.random.normal(kx, (B * N, C), jnp.float32)
    batch = jnp.repeat(jnp.arange(B), N)  # noqa: F841  (equal graphs -> dense batch = reshape)

    params = make_params(kp, C, HEADS)
    prep = prepare_params(params, heads=HEADS)

    out = gps_conv_forward(x_flat, prep, heads=HEADS, nodes=N)
    jax.block_until_ready(out)

    ref = reference_forward(x_flat, prep, heads=HEADS, nodes=N)
    assert out.shape == (B * N, C)
    assert bool(jnp.allclose(out, ref, atol=2e-2, rtol=2e-2)), "mismatch vs reference"

    print("KERNEL_OK")
</pallas_src>

<mosaic_0001>
module attributes {stable_mosaic.version = 11 : i64} {
  func.func @_gps_kernel(%arg0: i32, %arg1: memref<16x128xf32, #tpu.memory_space<vmem>>, %arg2: memref<16x16xf32, #tpu.memory_space<vmem>>, %arg3: memref<128x384xbf16, #tpu.memory_space<vmem>>, %arg4: memref<1x384xf32, #tpu.memory_space<vmem>>, %arg5: memref<128x128xbf16, #tpu.memory_space<vmem>>, %arg6: memref<1x128xf32, #tpu.memory_space<vmem>>, %arg7: memref<1x128xf32, #tpu.memory_space<vmem>>, %arg8: memref<128x128xbf16, #tpu.memory_space<vmem>>, %arg9: memref<1x128xf32, #tpu.memory_space<vmem>>, %arg10: memref<128x128xbf16, #tpu.memory_space<vmem>>, %arg11: memref<1x128xf32, #tpu.memory_space<vmem>>, %arg12: memref<1x128xf32, #tpu.memory_space<vmem>>, %arg13: memref<16x128xf32, #tpu.memory_space<vmem>>) attributes {dimension_semantics = [#tpu.dimension_semantics<parallel>], iteration_bounds = array<i64: 1>, scalar_prefetch = 0 : i64, scratch_operands = 0 : i64, tpu.core_type = #tpu.core_type<tc>, window_params = [{transform_indices = @transform_0, window_bounds = array<i64: 16, 128>}, {pipeline_mode = #tpu.pipeline_mode<synchronous>, transform_indices = @transform_1, window_bounds = array<i64: 16, 16>}, {pipeline_mode = #tpu.pipeline_mode<synchronous>, transform_indices = @transform_2, window_bounds = array<i64: 128, 384>}, {pipeline_mode = #tpu.pipeline_mode<synchronous>, transform_indices = @transform_3, window_bounds = array<i64: 1, 384>}, {pipeline_mode = #tpu.pipeline_mode<synchronous>, transform_indices = @transform_4, window_bounds = array<i64: 128, 128>}, {pipeline_mode = #tpu.pipeline_mode<synchronous>, transform_indices = @transform_5, window_bounds = array<i64: 1, 128>}, {pipeline_mode = #tpu.pipeline_mode<synchronous>, transform_indices = @transform_6, window_bounds = array<i64: 1, 128>}, {pipeline_mode = #tpu.pipeline_mode<synchronous>, transform_indices = @transform_7, window_bounds = array<i64: 128, 128>}, {pipeline_mode = #tpu.pipeline_mode<synchronous>, transform_indices = @transform_8, window_bounds = array<i64: 1, 128>}, {pipeline_mode = #tpu.pipeline_mode<synchronous>, transform_indices = @transform_9, window_bounds = array<i64: 128, 128>}, {pipeline_mode = #tpu.pipeline_mode<synchronous>, transform_indices = @transform_10, window_bounds = array<i64: 1, 128>}, {pipeline_mode = #tpu.pipeline_mode<synchronous>, transform_indices = @transform_11, window_bounds = array<i64: 1, 128>}, {transform_indices = @transform_12, window_bounds = array<i64: 16, 128>}]} {
    %c0 = arith.constant 0 : index
    %c0_0 = arith.constant 0 : index
    %0 = vector.load %arg1[%c0, %c0_0] : memref<16x128xf32, #tpu.memory_space<vmem>>, vector<16x128xf32>
    %1 = arith.truncf %0 : vector<16x128xf32> to vector<16x128xbf16>
    %c0_1 = arith.constant 0 : index
    %c0_2 = arith.constant 0 : index
    %2 = vector.load %arg3[%c0_1, %c0_2] : memref<128x384xbf16, #tpu.memory_space<vmem>>, vector<128x384xbf16>
    %cst = arith.constant dense<0.000000e+00> : vector<16x384xf32>
    %3 = tpu.matmul %1, %2, %cst {dimension_numbers = #tpu.dot_dimension_numbers<[1], [0], [0], [1], [0, 0, 1, 1], [], []>} : vector<16x128xbf16>, vector<128x384xbf16>, vector<16x384xf32> -> vector<16x384xf32>
    %c0_3 = arith.constant 0 : index
    %c0_4 = arith.constant 0 : index
    %4 = vector.load %arg4[%c0_3, %c0_4] : memref<1x384xf32, #tpu.memory_space<vmem>>, vector<1x384xf32>
    %5 = vector.broadcast %4 : vector<1x384xf32> to vector<16x384xf32>
    %6 = arith.addf %3, %5 : vector<16x384xf32>
    %7 = arith.truncf %6 : vector<16x384xf32> to vector<16x384xbf16>
    %c0_5 = arith.constant 0 : index
    %c0_6 = arith.constant 0 : index
    %8 = vector.load %arg2[%c0_5, %c0_6] : memref<16x16xf32, #tpu.memory_space<vmem>>, vector<16x16xf32>
    %c0_7 = arith.constant 0 : index
    %c0_8 = arith.constant 0 : index
    %9 = vector.load %arg5[%c0_7, %c0_8] : memref<128x128xbf16, #tpu.memory_space<vmem>>, vector<128x128xbf16>
    %cst_9 = arith.constant 0.000000e+00 : f32
    %10 = vector.broadcast %cst_9 : f32 to vector<16x128xf32>
    %11 = vector.extract_strided_slice %7 {offsets = [0, 0], sizes = [16, 64], strides = [1, 1]} : vector<16x384xbf16> to vector<16x64xbf16>
    %12 = vector.extract_strided_slice %7 {offsets = [0, 128], sizes = [16, 64], strides = [1, 1]} : vector<16x384xbf16> to vector<16x64xbf16>
    %13 = vector.extract_strided_slice %7 {offsets = [0, 256], sizes = [16, 64], strides = [1, 1]} : vector<16x384xbf16> to vector<16x64xbf16>
    %14 = tpu.transpose %12, [1, 0] : vector<16x64xbf16> -> vector<64x16xbf16>
    %cst_10 = arith.constant dense<0.000000e+00> : vector<16x16xf32>
    %15 = tpu.matmul %11, %14, %cst_10 {dimension_numbers = #tpu.dot_dimension_numbers<[1], [0], [0], [1], [0, 0, 1, 1], [], []>} : vector<16x64xbf16>, vector<64x16xbf16>, vector<16x16xf32> -> vector<16x16xf32>
    %16 = arith.addf %15, %8 : vector<16x16xf32>
    %cst_11 = arith.constant dense<0xFF800000> : vector<16xf32>
    %17 = vector.multi_reduction <maximumf>, %16, %cst_11 [1] : vector<16x16xf32> to vector<16xf32>
    %18 = vector.shape_cast %17 : vector<16xf32> to vector<16x1xf32>
    %19 = vector.broadcast %18 : vector<16x1xf32> to vector<16x16xf32>
    %20 = arith.subf %16, %19 : vector<16x16xf32>
    %21 = math.exp %20 : vector<16x16xf32>
    %cst_12 = arith.constant dense<0.000000e+00> : vector<16xf32>
    %22 = vector.multi_reduction <add>, %21, %cst_12 [1] : vector<16x16xf32> to vector<16xf32>
    %23 = vector.shape_cast %22 : vector<16xf32> to vector<16x1xf32>
    %24 = tpu.reciprocal %23 {approx = true} : vector<16x1xf32> -> vector<16x1xf32>
    %25 = vector.broadcast %24 : vector<16x1xf32> to vector<16x16xf32>
    %26 = arith.mulf %21, %25 : vector<16x16xf32>
    %27 = arith.truncf %26 : vector<16x16xf32> to vector<16x16xbf16>
    %cst_13 = arith.constant dense<0.000000e+00> : vector<16x64xf32>
    %28 = tpu.matmul %27, %13, %cst_13 {dimension_numbers = #tpu.dot_dimension_numbers<[1], [0], [0], [1], [0, 0, 1, 1], [], []>} : vector<16x16xbf16>, vector<16x64xbf16>, vector<16x64xf32> -> vector<16x64xf32>
    %29 = arith.truncf %28 : vector<16x64xf32> to vector<16x64xbf16>
    %30 = vector.extract_strided_slice %9 {offsets = [0, 0], sizes = [64, 128], strides = [1, 1]} : vector<128x128xbf16> to vector<64x128xbf16>
    %cst_14 = arith.constant dense<0.000000e+00> : vector<16x128xf32>
    %31 = tpu.matmul %29, %30, %cst_14 {dimension_numbers = #tpu.dot_dimension_numbers<[1], [0], [0], [1], [0, 0, 1, 1], [], []>} : vector<16x64xbf16>, vector<64x128xbf16>, vector<16x128xf32> -> vector<16x128xf32>
    %32 = arith.addf %10, %31 : vector<16x128xf32>
    %33 = vector.extract_strided_slice %7 {offsets = [0, 64], sizes = [16, 64], strides = [1, 1]} : vector<16x384xbf16> to vector<16x64xbf16>
    %34 = vector.extract_strided_slice %7 {offsets = [0, 192], sizes = [16, 64], strides = [1, 1]} : vector<16x384xbf16> to vector<16x64xbf16>
    %35 = vector.extract_strided_slice %7 {offsets = [0, 320], sizes = [16, 64], strides = [1, 1]} : vector<16x384xbf16> to vector<16x64xbf16>
    %36 = tpu.transpose %34, [1, 0] : vector<16x64xbf16> -> vector<64x16xbf16>
    %cst_15 = arith.constant dense<0.000000e+00> : vector<16x16xf32>
    %37 = tpu.matmul %33, %36, %cst_15 {dimension_numbers = #tpu.dot_dimension_numbers<[1], [0], [0], [1], [0, 0, 1, 1], [], []>} : vector<16x64xbf16>, vector<64x16xbf16>, vector<16x16xf32> -> vector<16x16xf32>
    %38 = arith.addf %37, %8 : vector<16x16xf32>
    %cst_16 = arith.constant dense<0xFF800000> : vector<16xf32>
    %39 = vector.multi_reduction <maximumf>, %38, %cst_16 [1] : vector<16x16xf32> to vector<16xf32>
    %40 = vector.shape_cast %39 : vector<16xf32> to vector<16x1xf32>
    %41 = vector.broadcast %40 : vector<16x1xf32> to vector<16x16xf32>
    %42 = arith.subf %38, %41 : vector<16x16xf32>
    %43 = math.exp %42 : vector<16x16xf32>
    %cst_17 = arith.constant dense<0.000000e+00> : vector<16xf32>
    %44 = vector.multi_reduction <add>, %43, %cst_17 [1] : vector<16x16xf32> to vector<16xf32>
    %45 = vector.shape_cast %44 : vector<16xf32> to vector<16x1xf32>
    %46 = tpu.reciprocal %45 {approx = true} : vector<16x1xf32> -> vector<16x1xf32>
    %47 = vector.broadcast %46 : vector<16x1xf32> to vector<16x16xf32>
    %48 = arith.mulf %43, %47 : vector<16x16xf32>
    %49 = arith.truncf %48 : vector<16x16xf32> to vector<16x16xbf16>
    %cst_18 = arith.constant dense<0.000000e+00> : vector<16x64xf32>
    %50 = tpu.matmul %49, %35, %cst_18 {dimension_numbers = #tpu.dot_dimension_numbers<[1], [0], [0], [1], [0, 0, 1, 1], [], []>} : vector<16x16xbf16>, vector<16x64xbf16>, vector<16x64xf32> -> vector<16x64xf32>
    %51 = arith.truncf %50 : vector<16x64xf32> to vector<16x64xbf16>
    %52 = vector.extract_strided_slice %9 {offsets = [64, 0], sizes = [64, 128], strides = [1, 1]} : vector<128x128xbf16> to vector<64x128xbf16>
    %cst_19 = arith.constant dense<0.000000e+00> : vector<16x128xf32>
    %53 = tpu.matmul %51, %52, %cst_19 {dimension_numbers = #tpu.dot_dimension_numbers<[1], [0], [0], [1], [0, 0, 1, 1], [], []>} : vector<16x64xbf16>, vector<64x128xbf16>, vector<16x128xf32> -> vector<16x128xf32>
    %54 = arith.addf %32, %53 : vector<16x128xf32>
    %55 = arith.addf %54, %0 : vector<16x128xf32>
    %c0_20 = arith.constant 0 : index
    %c0_21 = arith.constant 0 : index
    %56 = vector.load %arg6[%c0_20, %c0_21] : memref<1x128xf32, #tpu.memory_space<vmem>>, vector<1x128xf32>
    %57 = vector.broadcast %56 : vector<1x128xf32> to vector<16x128xf32>
    %58 = arith.mulf %55, %57 : vector<16x128xf32>
    %c0_22 = arith.constant 0 : index
    %c0_23 = arith.constant 0 : index
    %59 = vector.load %arg7[%c0_22, %c0_23] : memref<1x128xf32, #tpu.memory_space<vmem>>, vector<1x128xf32>
    %60 = vector.broadcast %59 : vector<1x128xf32> to vector<16x128xf32>
    %61 = arith.addf %58, %60 : vector<16x128xf32>
    %62 = arith.truncf %61 : vector<16x128xf32> to vector<16x128xbf16>
    %c0_24 = arith.constant 0 : index
    %c0_25 = arith.constant 0 : index
    %63 = vector.load %arg8[%c0_24, %c0_25] : memref<128x128xbf16, #tpu.memory_space<vmem>>, vector<128x128xbf16>
    %cst_26 = arith.constant dense<0.000000e+00> : vector<16x128xf32>
    %64 = tpu.matmul %62, %63, %cst_26 {dimension_numbers = #tpu.dot_dimension_numbers<[1], [0], [0], [1], [0, 0, 1, 1], [], []>} : vector<16x128xbf16>, vector<128x128xbf16>, vector<16x128xf32> -> vector<16x128xf32>
    %c0_27 = arith.constant 0 : index
    %c0_28 = arith.constant 0 : index
    %65 = vector.load %arg9[%c0_27, %c0_28] : memref<1x128xf32, #tpu.memory_space<vmem>>, vector<1x128xf32>
    %66 = vector.broadcast %65 : vector<1x128xf32> to vector<16x128xf32>
    %67 = arith.addf %64, %66 : vector<16x128xf32>
    %cst_29 = arith.constant 0.000000e+00 : f32
    %68 = vector.broadcast %cst_29 : f32 to vector<16x128xf32>
    %69 = arith.maximumf %67, %68 : vector<16x128xf32>
    %70 = arith.truncf %69 : vector<16x128xf32> to vector<16x128xbf16>
    %c0_30 = arith.constant 0 : index
    %c0_31 = arith.constant 0 : index
    %71 = vector.load %arg10[%c0_30, %c0_31] : memref<128x128xbf16, #tpu.memory_space<vmem>>, vector<128x128xbf16>
    %cst_32 = arith.constant dense<0.000000e+00> : vector<16x128xf32>
    %72 = tpu.matmul %70, %71, %cst_32 {dimension_numbers = #tpu.dot_dimension_numbers<[1], [0], [0], [1], [0, 0, 1, 1], [], []>} : vector<16x128xbf16>, vector<128x128xbf16>, vector<16x128xf32> -> vector<16x128xf32>
    %73 = arith.addf %61, %72 : vector<16x128xf32>
    %c0_33 = arith.constant 0 : index
    %c0_34 = arith.constant 0 : index
    %74 = vector.load %arg11[%c0_33, %c0_34] : memref<1x128xf32, #tpu.memory_space<vmem>>, vector<1x128xf32>
    %75 = vector.broadcast %74 : vector<1x128xf32> to vector<16x128xf32>
    %76 = arith.mulf %73, %75 : vector<16x128xf32>
    %c0_35 = arith.constant 0 : index
    %c0_36 = arith.constant 0 : index
    %77 = vector.load %arg12[%c0_35, %c0_36] : memref<1x128xf32, #tpu.memory_space<vmem>>, vector<1x128xf32>
    %78 = vector.broadcast %77 : vector<1x128xf32> to vector<16x128xf32>
    %79 = arith.addf %76, %78 : vector<16x128xf32>
    %c0_37 = arith.constant 0 : index
    %c0_38 = arith.constant 0 : index
    %80 = vector.load %arg13[%c0_37, %c0_38] : memref<16x128xf32, #tpu.memory_space<vmem>>, vector<16x128xf32>
    tpu.vector_store %arg13[%c0_37, %c0_38], %79 {strides = array<i32>} : memref<16x128xf32, #tpu.memory_space<vmem>>, vector<16x128xf32>,
    return
  }
  func.func @transform_0(%arg0: i32) -> (i32, i32) {
    %c0_i32 = arith.constant 0 : i32
    %c0_i32_0 = arith.constant 0 : i32
    return %arg0, %c0_i32 : i32, i32
  }
  func.func @transform_1(%arg0: i32) -> (i32, i32) {
    %c0_i32 = arith.constant 0 : i32
    %c0_i32_0 = arith.constant 0 : i32
    %c0_i32_1 = arith.constant 0 : i32
    return %c0_i32, %c0_i32_0 : i32, i32
  }
  func.func @transform_2(%arg0: i32) -> (i32, i32) {
    %c0_i32 = arith.constant 0 : i32
    %c0_i32_0 = arith.constant 0 : i32
    %c0_i32_1 = arith.constant 0 : i32
    return %c0_i32, %c0_i32_0 : i32, i32
  }
  func.func @transform_3(%arg0: i32) -> (i32, i32) {
    %c0_i32 = arith.constant 0 : i32
    %c0_i32_0 = arith.constant 0 : i32
    %c0_i32_1 = arith.constant 0 : i32
    return %c0_i32, %c0_i32_0 : i32, i32
  }
  func.func @transform_4(%arg0: i32) -> (i32, i32) {
    %c0_i32 = arith.constant 0 : i32
    %c0_i32_0 = arith.constant 0 : i32
    %c0_i32_1 = arith.constant 0 : i32
    return %c0_i32, %c0_i32_0 : i32, i32
  }
  func.func @transform_5(%arg0: i32) -> (i32, i32) {
    %c0_i32 = arith.constant 0 : i32
    %c0_i32_0 = arith.constant 0 : i32
    %c0_i32_1 = arith.constant 0 : i32
    return %c0_i32, %c0_i32_0 : i32, i32
  }
  func.func @transform_6(%arg0: i32) -> (i32, i32) {
    %c0_i32 = arith.constant 0 : i32
    %c0_i32_0 = arith.constant 0 : i32
    %c0_i32_1 = arith.constant 0 : i32
    return %c0_i32, %c0_i32_0 : i32, i32
  }
  func.func @transform_7(%arg0: i32) -> (i32, i32) {
    %c0_i32 = arith.constant 0 : i32
    %c0_i32_0 = arith.constant 0 : i32
    %c0_i32_1 = arith.constant 0 : i32
    return %c0_i32, %c0_i32_0 : i32, i32
  }
  func.func @transform_8(%arg0: i32) -> (i32, i32) {
    %c0_i32 = arith.constant 0 : i32
    %c0_i32_0 = arith.constant 0 : i32
    %c0_i32_1 = arith.constant 0 : i32
    return %c0_i32, %c0_i32_0 : i32, i32
  }
  func.func @transform_9(%arg0: i32) -> (i32, i32) {
    %c0_i32 = arith.constant 0 : i32
    %c0_i32_0 = arith.constant 0 : i32
    %c0_i32_1 = arith.constant 0 : i32
    return %c0_i32, %c0_i32_0 : i32, i32
  }
  func.func @transform_10(%arg0: i32) -> (i32, i32) {
    %c0_i32 = arith.constant 0 : i32
    %c0_i32_0 = arith.constant 0 : i32
    %c0_i32_1 = arith.constant 0 : i32
    return %c0_i32, %c0_i32_0 : i32, i32
  }
  func.func @transform_11(%arg0: i32) -> (i32, i32) {
    %c0_i32 = arith.constant 0 : i32
    %c0_i32_0 = arith.constant 0 : i32
    %c0_i32_1 = arith.constant 0 : i32
    return %c0_i32, %c0_i32_0 : i32, i32
  }
  func.func @transform_12(%arg0: i32) -> (i32, i32) {
    %c0_i32 = arith.constant 0 : i32
    %c0_i32_0 = arith.constant 0 : i32
    return %arg0, %c0_i32 : i32, i32
  }
}

</mosaic_0001>

<llo_original>
// kernel: tpu_custom_call.1
$region0: #{tpu_custom_call.1}
  #allocation0 [shape = 'u32[]', space=smem, size = 0x4, offset = 0x4, fixed_abs, tag = 'smem constant byte address 0x4 - core index']
  #allocation1 [shape = 'u32[144,128]{1,0:T(1,128)}', space=vmem, size = 0x12000, scoped, tag = 'internal scratch']
  %s0 = inlined_call_operand.hbm [shape: f32[16,128], index: 0, kind: input, shape index: {}]
  %s1 = inlined_call_operand.hbm [shape: f32[16,16], index: 1, kind: input, shape index: {}]
  %s2 = inlined_call_operand.hbm [shape: bf16[128,384], index: 2, kind: input, shape index: {}]
  %s3 = inlined_call_operand.vmem [shape: f32[1,384], index: 3, kind: input, shape index: {}]
  %s4 = inlined_call_operand.hbm [shape: bf16[128,128], index: 4, kind: input, shape index: {}]
  %s5 = inlined_call_operand.vmem [shape: f32[1,128], index: 5, kind: input, shape index: {}]
  %s6 = inlined_call_operand.vmem [shape: f32[1,128], index: 6, kind: input, shape index: {}]
  %s7 = inlined_call_operand.hbm [shape: bf16[128,128], index: 7, kind: input, shape index: {}]
  %s8 = inlined_call_operand.vmem [shape: f32[1,128], index: 8, kind: input, shape index: {}]
  %s9 = inlined_call_operand.hbm [shape: bf16[128,128], index: 9, kind: input, shape index: {}]
  %s10 = inlined_call_operand.vmem [shape: f32[1,128], index: 10, kind: input, shape index: {}]
  %s11 = inlined_call_operand.vmem [shape: f32[1,128], index: 11, kind: input, shape index: {}]
  %s12 = inlined_call_operand.hbm [shape: f32[16,128], index: 12, kind: output, shape index: {}]
  %s13 = sld [smem:[#allocation0]]
  $region82: #{tpu_custom_call.1} parent=0
    _
  %s15 = ssub.s32 1, %s13
  %s16 = scalar_select 0, %s15, %s13
  $region1: #{tpu_custom_call.1} parent=0
    #allocation2 [shape = 'u8[8192]{0}', space=vmem, size = 0x2000, scoped, tag = 'input window, operand 0, single buffered']
    #allocation3 [shape = 's32[1]{0}', space=sflag, size = 0x4, scoped, tag = 'scoped memory for tpu_custom_call.1']
    #allocation4 [shape = 's32[1]{0}', space=sflag, size = 0x4, scoped, tag = 'scoped memory for tpu_custom_call.1']
    #allocation5 [shape = 'u8[8192]{0}', space=vmem, size = 0x2000, scoped, tag = 'input window, operand 1, single buffered']
    #allocation6 [shape = 's32[1]{0}', space=sflag, size = 0x4, scoped, tag = 'scoped memory for tpu_custom_call.1']
    #allocation7 [shape = 'u8[98304]{0}', space=vmem, size = 0x18000, scoped, tag = 'input window, operand 2, single buffered']
    #allocation8 [shape = 'u8[32768]{0}', space=vmem, size = 0x8000, scoped, tag = 'input window, operand 4, single buffered']
    #allocation9 [shape = 's32[1]{0}', space=sflag, size = 0x4, scoped, tag = 'scoped memory for tpu_custom_call.1']
    #allocation10 [shape = 'u8[32768]{0}', space=vmem, size = 0x8000, scoped, tag = 'input window, operand 7, single buffered']
    #allocation11 [shape = 'u8[32768]{0}', space=vmem, size = 0x8000, scoped, tag = 'input window, operand 9, single buffered']
    #allocation12 [shape = 's32[1]{0}', space=sflag, size = 0x4, scoped, tag = 'scoped memory for tpu_custom_call.1']
    #allocation13 [shape = 'u8[8192]{0}', space=vmem, size = 0x2000, scoped, tag = 'output window, operand 0, single buffered']
    %17 = vsyncpa [#allocation3], 0
    %18 = vsyncpa [#allocation6], 0
    %19 = vsyncpa [#allocation9], 0
    %20 = vsyncpa [#allocation12], 0
    %21 = vsyncpa [#allocation4], 0
    // Predicated region
    $region2: #{tpu_custom_call.1} parent=1 // pred_check
      _
    $region3: #{tpu_custom_call.1} parent=1 // pred_check_branch
      %23 = sbr.rel (0) target = $region5
    $region4: #{tpu_custom_call.1} parent=1 // pred_region
      %s25 = ssub.s32 256, 256
      %26 = vsyncadd [#allocation3], %s25
      %s27 = sshll.u32 [#allocation2], 4
      %s28 = int_to_ptr.vmem [resolvable:$true] %s27
      %33 = dma.hbm_to_vmem [thread:$0]  %s0, 256, %s28, [#allocation3], 128, 128, 8
    $region5: #{tpu_custom_call.1} parent=1 // pred_fallthru
      _
    // Predicated region
    $region6: #{tpu_custom_call.1} parent=1 // pred_check
      _
    $region7: #{tpu_custom_call.1} parent=1 // pred_check_branch
      %35 = sbr.rel (0) target = $region9
    $region8: #{tpu_custom_call.1} parent=1 // pred_region
      %s37 = ssub.s32 256, 256
      %38 = vsyncadd [#allocation6], %s37
      %s39 = sshll.u32 [#allocation5], 4
      %s40 = int_to_ptr.vmem [resolvable:$true] %s39
      %45 = dma.hbm_to_vmem [thread:$0]  %s1, 256, %s40, [#allocation6], 128, 128, 8
    $region9: #{tpu_custom_call.1} parent=1 // pred_fallthru
      _
    // Predicated region
    $region10: #{tpu_custom_call.1} parent=1 // pred_check
      _
    $region11: #{tpu_custom_call.1} parent=1 // pred_check_branch
      %47 = sbr.rel (0) target = $region13
    $region12: #{tpu_custom_call.1} parent=1 // pred_region
      %s49 = ssub.s32 3072, 3072
      %50 = vsyncadd [#allocation6], %s49
      %s51 = sshll.u32 [#allocation7], 4
      %s52 = int_to_ptr.vmem [resolvable:$true] %s51
      %57 = dma.hbm_to_vmem [thread:$0]  %s2, 3072, %s52, [#allocation6], 192, 192, 12
    $region13: #{tpu_custom_call.1} parent=1 // pred_fallthru
      _
    // Predicated region
    $region14: #{tpu_custom_call.1} parent=1 // pred_check
      _
    $region15: #{tpu_custom_call.1} parent=1 // pred_check_branch
      %59 = sbr.rel (0) target = $region17
    $region16: #{tpu_custom_call.1} parent=1 // pred_region
      _
    $region17: #{tpu_custom_call.1} parent=1 // pred_fallthru
      _
    // Predicated region
    $region18: #{tpu_custom_call.1} parent=1 // pred_check
      _
    $region19: #{tpu_custom_call.1} parent=1 // pred_check_branch
      %61 = sbr.rel (0) target = $region21
    $region20: #{tpu_custom_call.1} parent=1 // pred_region
      %s63 = ssub.s32 1024, 1024
      %64 = vsyncadd [#allocation9], %s63
      %s65 = sshll.u32 [#allocation8], 4
      %s66 = int_to_ptr.vmem [resolvable:$true] %s65
      %71 = dma.hbm_to_vmem [thread:$0]  %s4, 1024, %s66, [#allocation9], 64, 64, 4
    $region21: #{tpu_custom_call.1} parent=1 // pred_fallthru
      _
    // Predicated region
    $region22: #{tpu_custom_call.1} parent=1 // pred_check
      _
    $region23: #{tpu_custom_call.1} parent=1 // pred_check_branch
      %73 = sbr.rel (0) target = $region25
    $region24: #{tpu_custom_call.1} parent=1 // pred_region
      _
    $region25: #{tpu_custom_call.1} parent=1 // pred_fallthru
      _
    // Predicated region
    $region26: #{tpu_custom_call.1} parent=1 // pred_check
      _
    $region27: #{tpu_custom_call.1} parent=1 // pred_check_branch
      %75 = sbr.rel (0) target = $region29
    $region28: #{tpu_custom_call.1} parent=1 // pred_region
      _
    $region29: #{tpu_custom_call.1} parent=1 // pred_fallthru
      _
    // Predicated region
    $region30: #{tpu_custom_call.1} parent=1 // pred_check
      _
    $region31: #{tpu_custom_call.1} parent=1 // pred_check_branch
      %77 = sbr.rel (0) target = $region33
    $region32: #{tpu_custom_call.1} parent=1 // pred_region
      %s79 = ssub.s32 1024, 1024
      %80 = vsyncadd [#allocation9], %s79
      %s81 = sshll.u32 [#allocation10], 4
      %s82 = int_to_ptr.vmem [resolvable:$true] %s81
      %87 = dma.hbm_to_vmem [thread:$0]  %s7, 1024, %s82, [#allocation9], 64, 64, 4
    $region33: #{tpu_custom_call.1} parent=1 // pred_fallthru
      _
    // Predicated region
    $region34: #{tpu_custom_call.1} parent=1 // pred_check
      _
    $region35: #{tpu_custom_call.1} parent=1 // pred_check_branch
      %89 = sbr.rel (0) target = $region37
    $region36: #{tpu_custom_call.1} parent=1 // pred_region
      _
    $region37: #{tpu_custom_call.1} parent=1 // pred_fallthru
      _
    // Predicated region
    $region38: #{tpu_custom_call.1} parent=1 // pred_check
      _
    $region39: #{tpu_custom_call.1} parent=1 // pred_check_branch
      %91 = sbr.rel (0) target = $region41
    $region40: #{tpu_custom_call.1} parent=1 // pred_region
      %s93 = ssub.s32 1024, 1024
      %94 = vsyncadd [#allocation12], %s93
      %s95 = sshll.u32 [#allocation11], 4
      %s96 = int_to_ptr.vmem [resolvable:$true] %s95
      %101 = dma.hbm_to_vmem [thread:$0]  %s9, 1024, %s96, [#allocation12], 64, 64, 4
    $region41: #{tpu_custom_call.1} parent=1 // pred_fallthru
      _
    // Predicated region
    $region42: #{tpu_custom_call.1} parent=1 // pred_check
      _
    $region43: #{tpu_custom_call.1} parent=1 // pred_check_branch
      %103 = sbr.rel (0) target = $region45
    $region44: #{tpu_custom_call.1} parent=1 // pred_region
      _
    $region45: #{tpu_custom_call.1} parent=1 // pred_fallthru
      _
    // Predicated region
    $region46: #{tpu_custom_call.1} parent=1 // pred_check
      _
    $region47: #{tpu_custom_call.1} parent=1 // pred_check_branch
      %105 = sbr.rel (0) target = $region49
    $region48: #{tpu_custom_call.1} parent=1 // pred_region
      _
    $region49: #{tpu_custom_call.1} parent=1 // pred_fallthru
      _
    // Predicated region
    $region50: #{tpu_custom_call.1} parent=1 // pred_check
      _
    $region51: #{tpu_custom_call.1} parent=1 // pred_check_branch
      %107 = sbr.rel (0) target = $region53
    $region52: #{tpu_custom_call.1} parent=1 // pred_region
      %108 = dma.done [#allocation3], 256
    $region53: #{tpu_custom_call.1} parent=1 // pred_fallthru
      _
    // Predicated region
    $region54: #{tpu_custom_call.1} parent=1 // pred_check
      _
    $region55: #{tpu_custom_call.1} parent=1 // pred_check_branch
      %110 = sbr.rel (0) target = $region57
    $region56: #{tpu_custom_call.1} parent=1 // pred_region
      %111 = dma.done [#allocation6], 256
    $region57: #{tpu_custom_call.1} parent=1 // pred_fallthru
      _
    // Predicated region
    $region58: #{tpu_custom_call.1} parent=1 // pred_check
      _
    $region59: #{tpu_custom_call.1} parent=1 // pred_check_branch
      %113 = sbr.rel (0) target = $region61
    $region60: #{tpu_custom_call.1} parent=1 // pred_region
      %114 = dma.done [#allocation6], 3072
    $region61: #{tpu_custom_call.1} parent=1 // pred_fallthru
      _
    // Predicated region
    $region62: #{tpu_custom_call.1} parent=1 // pred_check
      _
    $region63: #{tpu_custom_call.1} parent=1 // pred_check_branch
      %116 = sbr.rel (0) target = $region65
    $region64: #{tpu_custom_call.1} parent=1 // pred_region
      %117 = dma.done [#allocation9], 1024
    $region65: #{tpu_custom_call.1} parent=1 // pred_fallthru
      _
    // Predicated region
    $region66: #{tpu_custom_call.1} parent=1 // pred_check
      _
    $region67: #{tpu_custom_call.1} parent=1 // pred_check_branch
      %119 = sbr.rel (0) target = $region69
    $region68: #{tpu_custom_call.1} parent=1 // pred_region
      %120 = dma.done [#allocation9], 1024
    $region69: #{tpu_custom_call.1} parent=1 // pred_fallthru
      _
    // Predicated region
    $region70: #{tpu_custom_call.1} parent=1 // pred_check
      _
    $region71: #{tpu_custom_call.1} parent=1 // pred_check_branch
      %122 = sbr.rel (0) target = $region73
    $region72: #{tpu_custom_call.1} parent=1 // pred_region
      %123 = dma.done [#allocation12], 1024
    $region73: #{tpu_custom_call.1} parent=1 // pred_fallthru
      _
    %v125 = vld [vmem:[#allocation2] sm:$0xff]
    %v126 = vld [vmem:[#allocation2 + $0x8] sm:$0xff]
    %v127 = vpack.c.bf16 %v126, %v125
    %v128 = vld [vmem:[#allocation7] sm:$0xff]
    %v129 = vld [vmem:[#allocation7 + $0x8] sm:$0xf]
    %v130 = vld [vmem:[#allocation7 + $0xc] sm:$0xff]
    %v131 = vld [vmem:[#allocation7 + $0x14] sm:$0xf]
    %v132 = vld [vmem:[#allocation7 + $0x18] sm:$0xff]
    %v133 = vld [vmem:[#allocation7 + $0x20] sm:$0xf]
    %v134 = vld [vmem:[#allocation7 + $0x24] sm:$0xff]
    %v135 = vld [vmem:[#allocation7 + $0x2c] sm:$0xf]
    %v136 = vld [vmem:[#allocation7 + $0x30] sm:$0xff]
    %v137 = vld [vmem:[#allocation7 + $0x38] sm:$0xf]
    %v138 = vld [vmem:[#allocation7 + $0x3c] sm:$0xff]
    %v139 = vld [vmem:[#allocation7 + $0x44] sm:$0xf]
    %v140 = vld [vmem:[#allocation7 + $0x48] sm:$0xff]
    %v141 = vld [vmem:[#allocation7 + $0x50] sm:$0xf]
    %v142 = vld [vmem:[#allocation7 + $0x54] sm:$0xff]
    %v143 = vld [vmem:[#allocation7 + $0x5c] sm:$0xf]
    %v144 = vld [vmem:[#allocation7 + $0x60] sm:$0xff]
    %v145 = vld [vmem:[#allocation7 + $0x68] sm:$0xf]
    %v146 = vld [vmem:[#allocation7 + $0x6c] sm:$0xff]
    %v147 = vld [vmem:[#allocation7 + $0x74] sm:$0xf]
    %v148 = vld [vmem:[#allocation7 + $0x78] sm:$0xff]
    %v149 = vld [vmem:[#allocation7 + $0x80] sm:$0xf]
    %v150 = vld [vmem:[#allocation7 + $0x84] sm:$0xff]
    %v151 = vld [vmem:[#allocation7 + $0x8c] sm:$0xf]
    %v152 = vld [vmem:[#allocation7 + $0x90] sm:$0xff]
    %v153 = vld [vmem:[#allocation7 + $0x98] sm:$0xf]
    %v154 = vld [vmem:[#allocation7 + $0x9c] sm:$0xff]
    %v155 = vld [vmem:[#allocation7 + $0xa4] sm:$0xf]
    %v156 = vld [vmem:[#allocation7 + $0xa8] sm:$0xff]
    %v157 = vld [vmem:[#allocation7 + $0xb0] sm:$0xf]
    %v158 = vld [vmem:[#allocation7 + $0xb4] sm:$0xff]
    %v159 = vld [vmem:[#allocation7 + $0xbc] sm:$0xf]
    %v160 = vld [vmem:[%s3] sm:$0x7]
    %v162 = vlaneseq
    %v163 = vshrl.u32 %v162, 7
    %v164 = vsub.s32 0, %v163
    %v165 = vrot.slane %v160, %v164
    %v166 = vlaneseq
    %v167 = vshrl.u32 %v166, 7
    %v168 = vsub.s32 1, %v167
    %v169 = vrot.slane %v160, %v168
    %v170 = vlaneseq
    %v171 = vshrl.u32 %v170, 7
    %v172 = vsub.s32 2, %v171
    %v173 = vrot.slane %v160, %v172
    %v209 = vunpack.c.l.b16 %v128
    %v210 = vunpack.c.h.b16 %v128
    %v211 = vunpack.c.l.b16 %v129
    %v212 = vunpack.c.l.b16 %v130
    %v213 = vunpack.c.h.b16 %v130
    %v214 = vunpack.c.l.b16 %v131
    %v215 = vunpack.c.l.b16 %v132
    %v216 = vunpack.c.h.b16 %v132
    %v217 = vunpack.c.l.b16 %v133
    %v218 = vunpack.c.l.b16 %v134
    %v219 = vunpack.c.h.b16 %v134
    %v220 = vunpack.c.l.b16 %v135
    %v221 = vunpack.c.l.b16 %v136
    %v222 = vunpack.c.h.b16 %v136
    %v223 = vunpack.c.l.b16 %v137
    %v224 = vunpack.c.l.b16 %v138
    %v225 = vunpack.c.h.b16 %v138
    %v226 = vunpack.c.l.b16 %v139
    %v227 = vunpack.c.l.b16 %v140
    %v228 = vunpack.c.h.b16 %v140
    %v229 = vunpack.c.l.b16 %v141
    %v230 = vunpack.c.l.b16 %v142
    %v231 = vunpack.c.h.b16 %v142
    %v232 = vunpack.c.l.b16 %v143
    %v233 = vunpack.c.l.b16 %v144
    %v234 = vunpack.c.h.b16 %v144
    %v235 = vunpack.c.l.b16 %v145
    %v236 = vunpack.c.l.b16 %v146
    %v237 = vunpack.c.h.b16 %v146
    %v238 = vunpack.c.l.b16 %v147
    %v239 = vunpack.c.l.b16 %v148
    %v240 = vunpack.c.h.b16 %v148
    %v241 = vunpack.c.l.b16 %v149
    %v242 = vunpack.c.l.b16 %v150
    %v243 = vunpack.c.h.b16 %v150
    %v244 = vunpack.c.l.b16 %v151
    %v245 = vunpack.c.l.b16 %v152
    %v246 = vunpack.c.h.b16 %v152
    %v247 = vunpack.c.l.b16 %v153
    %v248 = vunpack.c.l.b16 %v154
    %v249 = vunpack.c.h.b16 %v154
    %v250 = vunpack.c.l.b16 %v155
    %v251 = vunpack.c.l.b16 %v156
    %v252 = vunpack.c.h.b16 %v156
    %v253 = vunpack.c.l.b16 %v157
    %v254 = vunpack.c.l.b16 %v158
    %v255 = vunpack.c.h.b16 %v158
    %v256 = vunpack.c.l.b16 %v159
    %v257 = vpack.c.b16 %v212, %v209
    %v258 = vpack.c.b16 %v213, %v210
    %v259 = vpack.c.b16 %v214, %v211
    %v260 = vpack.c.b16 %v218, %v215
    %v261 = vpack.c.b16 %v219, %v216
    %v262 = vpack.c.b16 %v220, %v217
    %v263 = vpack.c.b16 %v224, %v221
    %v264 = vpack.c.b16 %v225, %v222
    %v265 = vpack.c.b16 %v226, %v223
    %v266 = vpack.c.b16 %v230, %v227
    %v267 = vpack.c.b16 %v231, %v228
    %v268 = vpack.c.b16 %v232, %v229
    %v269 = vpack.c.b16 %v236, %v233
    %v270 = vpack.c.b16 %v237, %v234
    %v271 = vpack.c.b16 %v238, %v235
    %v272 = vpack.c.b16 %v242, %v239
    %v273 = vpack.c.b16 %v243, %v240
    %v274 = vpack.c.b16 %v244, %v241
    %v275 = vpack.c.b16 %v248, %v245
    %v276 = vpack.c.b16 %v249, %v246
    %v277 = vpack.c.b16 %v250, %v247
    %v278 = vpack.c.b16 %v254, %v251
    %v279 = vpack.c.b16 %v255, %v252
    %v280 = vpack.c.b16 %v256, %v253
    %305 = vmatprep.subr.bf16.mxu0 %v258
    %306 = vmatpush1.bf16.msra.mxu0 %v257
    %307 = vmatprep.subr.bf16.mxu0 %v261
    %308 = vmatpush1.bf16.msra.mxu0 %v260
    %309 = vmatprep.subr.bf16.mxu0 %v264
    %310 = vmatpush1.bf16.msra.mxu0 %v263
    %311 = vmatprep.subr.bf16.mxu0 %v267
    %312 = vmatpush1.bf16.msra.mxu0 %v266
    %313 = vmatprep.subr.bf16.mxu0 %v270
    %314 = vmatpush1.bf16.msra.mxu0 %v269
    %315 = vmatprep.subr.bf16.mxu0 %v273
    %316 = vmatpush1.bf16.msra.mxu0 %v272
    %317 = vmatprep.subr.bf16.mxu0 %v276
    %318 = vmatpush1.bf16.msra.mxu0 %v275
    %319 = vmatprep.subr.bf16.mxu0 %v279
    %320 = vmatpush1.bf16.msra.mxu0 %v278
    %321 = vmatprep.subr.bf16.mxu0 0
    %322 = vmatpush1.bf16.msra.mxu0 0
    %323 = vmatprep.subr.bf16.mxu0 0
    %324 = vmatpush1.bf16.msra.mxu0 0
    %325 = vmatprep.subr.bf16.mxu0 0
    %326 = vmatpush1.bf16.msra.mxu0 0
    %327 = vmatprep.subr.bf16.mxu0 0
    %328 = vmatpush1.bf16.msra.mxu0 0
    %329 = vmatprep.subr.bf16.mxu0 0
    %330 = vmatpush1.bf16.msra.mxu0 0
    %331 = vmatprep.subr.bf16.mxu0 0
    %332 = vmatpush1.bf16.msra.mxu0 0
    %333 = vmatprep.subr.bf16.mxu0 0
    %334 = vmatpush1.bf16.msra.mxu0 0
    %335 = vmatprep.subr.bf16.mxu0 0
    %336 = vmatpush1.bf16.msra.mxu0 0
    %337 = vmatprep.mubr.bf16.mxu0 0
    %338 = vmatmul.mubr.bf16.gmra.mrb[0].mxu0 %v127
    %v339 = vpop.f32.mrb[0].mxu0
    %v340 = vadd.f32 %v165, %v339
    %v341 = vpop.f32.mrb[0].mxu0
    %v342 = vadd.f32 %v169, %v341
    %v343 = vpop.f32.mrb[0].mxu0
    %v344 = vadd.f32 %v165, %v343
    %v345 = vpop.f32.mrb[0].mxu0
    %v346 = vadd.f32 %v169, %v345
    %347 = vdwg.mxu0
    %348 = vmatprep.subr.bf16.mxu0 0
    %349 = vmatpush1.bf16.msra.mxu0 %v259
    %350 = vmatprep.subr.bf16.mxu0 0
    %351 = vmatpush1.bf16.msra.mxu0 %v262
    %352 = vmatprep.subr.bf16.mxu0 0
    %353 = vmatpush1.bf16.msra.mxu0 %v265
    %354 = vmatprep.subr.bf16.mxu0 0
    %355 = vmatpush1.bf16.msra.mxu0 %v268
    %356 = vmatprep.subr.bf16.mxu0 0
    %357 = vmatpush1.bf16.msra.mxu0 %v271
    %358 = vmatprep.subr.bf16.mxu0 0
    %359 = vmatpush1.bf16.msra.mxu0 %v274
    %360 = vmatprep.subr.bf16.mxu0 0
    %361 = vmatpush1.bf16.msra.mxu0 %v277
    %362 = vmatprep.subr.bf16.mxu0 0
    %363 = vmatpush1.bf16.msra.mxu0 %v280
    %364 = vmatprep.subr.bf16.mxu0 0
    %365 = vmatpush1.bf16.msra.mxu0 0
    %366 = vmatprep.subr.bf16.mxu0 0
    %367 = vmatpush1.bf16.msra.mxu0 0
    %368 = vmatprep.subr.bf16.mxu0 0
    %369 = vmatpush1.bf16.msra.mxu0 0
    %370 = vmatprep.subr.bf16.mxu0 0
    %371 = vmatpush1.bf16.msra.mxu0 0
    %372 = vmatprep.subr.bf16.mxu0 0
    %373 = vmatpush1.bf16.msra.mxu0 0
    %374 = vmatprep.subr.bf16.mxu0 0
    %375 = vmatpush1.bf16.msra.mxu0 0
    %376 = vmatprep.subr.bf16.mxu0 0
    %377 = vmatpush1.bf16.msra.mxu0 0
    %378 = vmatprep.subr.bf16.mxu0 0
    %379 = vmatpush1.bf16.msra.mxu0 0
    %380 = vmatprep.mubr.bf16.mxu0 0
    %381 = vmatmul.mubr.bf16.gmra.mrb[0].mxu0 %v127
    %v382 = vpop.f32.mrb[0].mxu0
    %v383 = vadd.f32 %v173, %v382
    %v384 = vpop.f32.mrb[0].mxu0
    %v385 = vpop.f32.mrb[0].mxu0
    %v386 = vadd.f32 %v173, %v385
    %v387 = vpop.f32.mrb[0].mxu0
    %388 = vdwg.mxu0
    %v389 = vpack.c.bf16 %v344, %v340
    %v390 = vpack.c.bf16 %v346, %v342
    %v391 = vpack.c.bf16 %v386, %v383
    %v392 = vld [vmem:[#allocation5] sm:$0xff]
    %v393 = vld [vmem:[#allocation5 + $0x8] sm:$0xff]
    %v394 = vld [vmem:[#allocation8] sm:$0xf]
    %v395 = vld [vmem:[#allocation8 + $0x4] sm:$0xf]
    %v396 = vld [vmem:[#allocation8 + $0x8] sm:$0xf]
    %v397 = vld [vmem:[#allocation8 + $0xc] sm:$0xf]
    %v398 = vld [vmem:[#allocation8 + $0x10] sm:$0xf]
    %v399 = vld [vmem:[#allocation8 + $0x14] sm:$0xf]
    %v400 = vld [vmem:[#allocation8 + $0x18] sm:$0xf]
    %v401 = vld [vmem:[#allocation8 + $0x1c] sm:$0xf]
    %v402 = vld [vmem:[#allocation8 + $0x20] sm:$0xf]
    %v403 = vld [vmem:[#allocation8 + $0x24] sm:$0xf]
    %v404 = vld [vmem:[#allocation8 + $0x28] sm:$0xf]
    %v405 = vld [vmem:[#allocation8 + $0x2c] sm:$0xf]
    %v406 = vld [vmem:[#allocation8 + $0x30] sm:$0xf]
    %v407 = vld [vmem:[#allocation8 + $0x34] sm:$0xf]
    %v408 = vld [vmem:[#allocation8 + $0x38] sm:$0xf]
    %v409 = vld [vmem:[#allocation8 + $0x3c] sm:$0xf]
    %vm410 = vcmask 523264
    %v412 = vsel %vm410, %v389, 0
    %v415 = vsel %vm410, %v390, 0
    %417 = vmatprep.subr.bf16.mxu0 0
    %418 = vmatpush1.bf16.xpose.msra.mxu0 %v415
    %419 = vmatprep.subr.bf16.mxu0 0
    %420 = vmatpush1.bf16.xpose.msra.mxu0 0
    %421 = vmatprep.subr.bf16.mxu0 0
    %422 = vmatpush1.bf16.xpose.msra.mxu0 0
    %423 = vmatprep.subr.bf16.mxu0 0
    %424 = vmatpush1.bf16.xpose.msra.mxu0 0
    %425 = vmatprep.subr.bf16.mxu0 0
    %426 = vmatpush1.bf16.xpose.msra.mxu0 0
    %427 = vmatprep.subr.bf16.mxu0 0
    %428 = vmatpush1.bf16.xpose.msra.mxu0 0
    %429 = vmatprep.subr.bf16.mxu0 0
    %430 = vmatpush1.bf16.xpose.msra.mxu0 0
    %431 = vmatprep.subr.bf16.mxu0 0
    %432 = vmatpush1.bf16.xpose.msra.mxu0 0
    %433 = vmatprep.subr.bf16.mxu0 0
    %434 = vmatpush1.bf16.xpose.msra.mxu0 0
    %435 = vmatprep.subr.bf16.mxu0 0
    %436 = vmatpush1.bf16.xpose.msra.mxu0 0
    %437 = vmatprep.subr.bf16.mxu0 0
    %438 = vmatpush1.bf16.xpose.msra.mxu0 0
    %439 = vmatprep.subr.bf16.mxu0 0
    %440 = vmatpush1.bf16.xpose.msra.mxu0 0
    %441 = vmatprep.subr.bf16.mxu0 0
    %442 = vmatpush1.bf16.xpose.msra.mxu0 0
    %443 = vmatprep.subr.bf16.mxu0 0
    %444 = vmatpush1.bf16.xpose.msra.mxu0 0
    %445 = vmatprep.subr.bf16.mxu0 0
    %446 = vmatpush1.bf16.xpose.msra.mxu0 0
    %447 = vmatprep.subr.bf16.mxu0 0
    %448 = vmatpush1.bf16.xpose.msra.mxu0 0
    %449 = vmatprep.mubr.bf16.mxu0 0
    %450 = vmatmul.mubr.bf16.gmra.mrb[0].mxu0 %v412
    %v451 = vpop.f32.mrb[0].mxu0
    %v452 = vadd.f32 %v392, %v451
    %v453 = vpop.f32.mrb[0].mxu0
    %v454 = vpop.f32.mrb[0].mxu0
    %v455 = vadd.f32 %v393, %v454
    %v456 = vpop.f32.mrb[0].mxu0
    %457 = vdwg.mxu0
    %vm458 = vcmask 130048
    %v459 = vsel %vm458, %v452, -inf
    %460 = vmax.xlane.f32.xlu0 %v459
    %v461 = vpop.xlane.xlu0 %460
    %v462 = vsel %vm458, %v455, -inf
    %463 = vmax.xlane.f32.xlu0 %v462
    %v464 = vpop.xlane.xlu0 %463
    %v465 = vsub.f32 %v452, %v461
    %v466 = vsub.f32 %v455, %v464
    %v467 = vmul.f32 %v465, 1.442695
    %v468 = vpow.pop %v467
    %v469 = vmul.f32 %v466, 1.442695
    %v470 = vpow.pop %v469
    %v471 = vsel %vm458, %v468, 0.0
    %472 = vadd.xlane.f32.xlu0 %v471
    %v473 = vpop.xlane.xlu0 %472
    %v474 = vsel %vm458, %v470, 0.0
    %475 = vadd.xlane.f32.xlu0 %v474
    %v476 = vpop.xlane.xlu0 %475
    %v477 = vrcp.pop %v473
    %v478 = vrcp.pop %v476
    %v479 = vmul.f32 %v468, %v477
    %v480 = vmul.f32 %v470, %v478
    %v481 = vpack.c.bf16 %v480, %v479
    %v483 = vsel %vm458, %v481, 0
    %485 = vmatprep.subr.bf16.mxu0 0
    %486 = vmatpush1.bf16.msra.mxu0 %v391
    %487 = vmatprep.subr.bf16.mxu0 0
    %488 = vmatpush1.bf16.msra.mxu0 0
    %489 = vmatprep.subr.bf16.mxu0 0
    %490 = vmatpush1.bf16.msra.mxu0 0
    %491 = vmatprep.subr.bf16.mxu0 0
    %492 = vmatpush1.bf16.msra.mxu0 0
    %493 = vmatprep.subr.bf16.mxu0 0
    %494 = vmatpush1.bf16.msra.mxu0 0
    %495 = vmatprep.subr.bf16.mxu0 0
    %496 = vmatpush1.bf16.msra.mxu0 0
    %497 = vmatprep.subr.bf16.mxu0 0
    %498 = vmatpush1.bf16.msra.mxu0 0
    %499 = vmatprep.subr.bf16.mxu0 0
    %500 = vmatpush1.bf16.msra.mxu0 0
    %501 = vmatprep.subr.bf16.mxu0 0
    %502 = vmatpush1.bf16.msra.mxu0 0
    %503 = vmatprep.subr.bf16.mxu0 0
    %504 = vmatpush1.bf16.msra.mxu0 0
    %505 = vmatprep.subr.bf16.mxu0 0
    %506 = vmatpush1.bf16.msra.mxu0 0
    %507 = vmatprep.subr.bf16.mxu0 0
    %508 = vmatpush1.bf16.msra.mxu0 0
    %509 = vmatprep.subr.bf16.mxu0 0
    %510 = vmatpush1.bf16.msra.mxu0 0
    %511 = vmatprep.subr.bf16.mxu0 0
    %512 = vmatpush1.bf16.msra.mxu0 0
    %513 = vmatprep.subr.bf16.mxu0 0
    %514 = vmatpush1.bf16.msra.mxu0 0
    %515 = vmatprep.subr.bf16.mxu0 0
    %516 = vmatpush1.bf16.msra.mxu0 0
    %517 = vmatprep.mubr.bf16.mxu0 0
    %518 = vmatmul.mubr.bf16.gmra.mrb[0].mxu0 %v483
    %v519 = vpop.f32.mrb[0].mxu0
    %v520 = vadd.f32 0.0, %v519
    %v521 = vpop.f32.mrb[0].mxu0
    %v522 = vpop.f32.mrb[0].mxu0
    %v523 = vadd.f32 0.0, %v522
    %v524 = vpop.f32.mrb[0].mxu0
    %525 = vdwg.mxu0
    %v526 = vpack.c.bf16 %v523, %v520
    %528 = vrot.lane.b32.xlu0 %v389, 64
    %v529 = vpop.permute.xlu0 %528
    %531 = vrot.lane.b32.xlu0 %v390, 64
    %v532 = vpop.permute.xlu0 %531
    %v534 = vsel %vm410, %v529, 0
    %v537 = vsel %vm410, %v532, 0
    %539 = vmatprep.subr.bf16.mxu0 0
    %540 = vmatpush1.bf16.xpose.msra.mxu0 %v537
    %541 = vmatprep.subr.bf16.mxu0 0
    %542 = vmatpush1.bf16.xpose.msra.mxu0 0
    %543 = vmatprep.subr.bf16.mxu0 0
    %544 = vmatpush1.bf16.xpose.msra.mxu0 0
    %545 = vmatprep.subr.bf16.mxu0 0
    %546 = vmatpush1.bf16.xpose.msra.mxu0 0
    %547 = vmatprep.subr.bf16.mxu0 0
    %548 = vmatpush1.bf16.xpose.msra.mxu0 0
    %549 = vmatprep.subr.bf16.mxu0 0
    %550 = vmatpush1.bf16.xpose.msra.mxu0 0
    %551 = vmatprep.subr.bf16.mxu0 0
    %552 = vmatpush1.bf16.xpose.msra.mxu0 0
    %553 = vmatprep.subr.bf16.mxu0 0
    %554 = vmatpush1.bf16.xpose.msra.mxu0 0
    %555 = vmatprep.subr.bf16.mxu0 0
    %556 = vmatpush1.bf16.xpose.msra.mxu0 0
    %557 = vmatprep.subr.bf16.mxu0 0
    %558 = vmatpush1.bf16.xpose.msra.mxu0 0
    %559 = vmatprep.subr.bf16.mxu0 0
    %560 = vmatpush1.bf16.xpose.msra.mxu0 0
    %561 = vmatprep.subr.bf16.mxu0 0
    %562 = vmatpush1.bf16.xpose.msra.mxu0 0
    %563 = vmatprep.subr.bf16.mxu0 0
    %564 = vmatpush1.bf16.xpose.msra.mxu0 0
    %565 = vmatprep.subr.bf16.mxu0 0
    %566 = vmatpush1.bf16.xpose.msra.mxu0 0
    %567 = vmatprep.subr.bf16.mxu0 0
    %568 = vmatpush1.bf16.xpose.msra.mxu0 0
    %569 = vmatprep.subr.bf16.mxu0 0
    %570 = vmatpush1.bf16.xpose.msra.mxu0 0
    %571 = vmatprep.mubr.bf16.mxu0 0
    %572 = vmatmul.mubr.bf16.gmra.mrb[0].mxu0 %v534
    %v573 = vpop.f32.mrb[0].mxu0
    %v574 = vadd.f32 %v392, %v573
    %v575 = vpop.f32.mrb[0].mxu0
    %v576 = vpop.f32.mrb[0].mxu0
    %v577 = vadd.f32 %v393, %v576
    %v578 = vpop.f32.mrb[0].mxu0
    %579 = vdwg.mxu0
    %v580 = vsel %vm458, %v574, -inf
    %581 = vmax.xlane.f32.xlu0 %v580
    %v582 = vpop.xlane.xlu0 %581
    %v583 = vsel %vm458, %v577, -inf
    %584 = vmax.xlane.f32.xlu0 %v583
    %v585 = vpop.xlane.xlu0 %584
    %v586 = vsub.f32 %v574, %v582
    %v587 = vsub.f32 %v577, %v585
    %v588 = vmul.f32 %v586, 1.442695
    %v589 = vpow.pop %v588
    %v590 = vmul.f32 %v587, 1.442695
    %v591 = vpow.pop %v590
    %v592 = vsel %vm458, %v589, 0.0
    %593 = vadd.xlane.f32.xlu0 %v592
    %v594 = vpop.xlane.xlu0 %593
    %v595 = vsel %vm458, %v591, 0.0
    %596 = vadd.xlane.f32.xlu0 %v595
    %v597 = vpop.xlane.xlu0 %596
    %v598 = vrcp.pop %v594
    %v599 = vrcp.pop %v597
    %v600 = vmul.f32 %v589, %v598
    %v601 = vmul.f32 %v591, %v599
    %v602 = vpack.c.bf16 %v601, %v600
    %604 = vrot.lane.b32.xlu0 %v391, 64
    %v605 = vpop.permute.xlu0 %604
    %v608 = vsel %vm458, %v602, 0
    %610 = vmatprep.subr.bf16.mxu0 0
    %611 = vmatpush1.bf16.msra.mxu0 %v605
    %612 = vmatprep.subr.bf16.mxu0 0
    %613 = vmatpush1.bf16.msra.mxu0 0
    %614 = vmatprep.subr.bf16.mxu0 0
    %615 = vmatpush1.bf16.msra.mxu0 0
    %616 = vmatprep.subr.bf16.mxu0 0
    %617 = vmatpush1.bf16.msra.mxu0 0
    %618 = vmatprep.subr.bf16.mxu0 0
    %619 = vmatpush1.bf16.msra.mxu0 0
    %620 = vmatprep.subr.bf16.mxu0 0
    %621 = vmatpush1.bf16.msra.mxu0 0
    %622 = vmatprep.subr.bf16.mxu0 0
    %623 = vmatpush1.bf16.msra.mxu0 0
    %624 = vmatprep.subr.bf16.mxu0 0
    %625 = vmatpush1.bf16.msra.mxu0 0
    %626 = vmatprep.subr.bf16.mxu0 0
    %627 = vmatpush1.bf16.msra.mxu0 0
    %628 = vmatprep.subr.bf16.mxu0 0
    %629 = vmatpush1.bf16.msra.mxu0 0
    %630 = vmatprep.subr.bf16.mxu0 0
    %631 = vmatpush1.bf16.msra.mxu0 0
    %632 = vmatprep.subr.bf16.mxu0 0
    %633 = vmatpush1.bf16.msra.mxu0 0
    %634 = vmatprep.subr.bf16.mxu0 0
    %635 = vmatpush1.bf16.msra.mxu0 0
    %636 = vmatprep.subr.bf16.mxu0 0
    %637 = vmatpush1.bf16.msra.mxu0 0
    %638 = vmatprep.subr.bf16.mxu0 0
    %639 = vmatpush1.bf16.msra.mxu0 0
    %640 = vmatprep.subr.bf16.mxu0 0
    %641 = vmatpush1.bf16.msra.mxu0 0
    %642 = vmatprep.mubr.bf16.mxu0 0
    %643 = vmatmul.mubr.bf16.gmra.mrb[0].mxu0 %v608
    %v644 = vpop.f32.mrb[0].mxu0
    %v645 = vadd.f32 0.0, %v644
    %v646 = vpop.f32.mrb[0].mxu0
    %v647 = vpop.f32.mrb[0].mxu0
    %v648 = vadd.f32 0.0, %v647
    %v649 = vpop.f32.mrb[0].mxu0
    %650 = vdwg.mxu0
    %v651 = vpack.c.bf16 %v648, %v645
    %v660 = vunpack.c.l.b16 %v402
    %v661 = vunpack.c.l.b16 %v403
    %v662 = vunpack.c.l.b16 %v404
    %v663 = vunpack.c.l.b16 %v405
    %v664 = vunpack.c.l.b16 %v406
    %v665 = vunpack.c.l.b16 %v407
    %v666 = vunpack.c.l.b16 %v408
    %v667 = vunpack.c.l.b16 %v409
    %v668 = vpack.c.b16 %v661, %v660
    %v669 = vpack.c.b16 %v663, %v662
    %v670 = vpack.c.b16 %v665, %v664
    %v671 = vpack.c.b16 %v667, %v666
    %v677 = vsel %vm410, %v651, 0
    %679 = vmatprep.subr.bf16.mxu0 0
    %680 = vmatpush1.bf16.msra.mxu0 %v668
    %681 = vmatprep.subr.bf16.mxu0 0
    %682 = vmatpush1.bf16.msra.mxu0 %v669
    %683 = vmatprep.subr.bf16.mxu0 0
    %684 = vmatpush1.bf16.msra.mxu0 %v670
    %685 = vmatprep.subr.bf16.mxu0 0
    %686 = vmatpush1.bf16.msra.mxu0 %v671
    %687 = vmatprep.subr.bf16.mxu0 0
    %688 = vmatpush1.bf16.msra.mxu0 0
    %689 = vmatprep.subr.bf16.mxu0 0
    %690 = vmatpush1.bf16.msra.mxu0 0
    %691 = vmatprep.subr.bf16.mxu0 0
    %692 = vmatpush1.bf16.msra.mxu0 0
    %693 = vmatprep.subr.bf16.mxu0 0
    %694 = vmatpush1.bf16.msra.mxu0 0
    %695 = vmatprep.subr.bf16.mxu0 0
    %696 = vmatpush1.bf16.msra.mxu0 0
    %697 = vmatprep.subr.bf16.mxu0 0
    %698 = vmatpush1.bf16.msra.mxu0 0
    %699 = vmatprep.subr.bf16.mxu0 0
    %700 = vmatpush1.bf16.msra.mxu0 0
    %701 = vmatprep.subr.bf16.mxu0 0
    %702 = vmatpush1.bf16.msra.mxu0 0
    %703 = vmatprep.subr.bf16.mxu0 0
    %704 = vmatpush1.bf16.msra.mxu0 0
    %705 = vmatprep.subr.bf16.mxu0 0
    %706 = vmatpush1.bf16.msra.mxu0 0
    %707 = vmatprep.subr.bf16.mxu0 0
    %708 = vmatpush1.bf16.msra.mxu0 0
    %709 = vmatprep.subr.bf16.mxu0 0
    %710 = vmatpush1.bf16.msra.mxu0 0
    %711 = vmatprep.mubr.bf16.mxu0 0
    %712 = vmatmul.mubr.bf16.gmra.mrb[0].mxu0 %v677
    %v713 = vpop.f32.mrb[0].mxu0
    %v714 = vadd.f32 0.0, %v713
    %v715 = vpop.f32.mrb[0].mxu0
    %v716 = vpop.f32.mrb[0].mxu0
    %v717 = vadd.f32 0.0, %v716
    %v718 = vpop.f32.mrb[0].mxu0
    %719 = vdwg.mxu0
    %v728 = vunpack.c.l.b16 %v394
    %v729 = vunpack.c.l.b16 %v395
    %v730 = vunpack.c.l.b16 %v396
    %v731 = vunpack.c.l.b16 %v397
    %v732 = vunpack.c.l.b16 %v398
    %v733 = vunpack.c.l.b16 %v399
    %v734 = vunpack.c.l.b16 %v400
    %v735 = vunpack.c.l.b16 %v401
    %v736 = vpack.c.b16 %v729, %v728
    %v737 = vpack.c.b16 %v731, %v730
    %v738 = vpack.c.b16 %v733, %v732
    %v739 = vpack.c.b16 %v735, %v734
    %v745 = vsel %vm410, %v526, 0
    %747 = vmatprep.subr.bf16.mxu0 0
    %748 = vmatpush1.bf16.msra.mxu0 %v736
    %749 = vmatprep.subr.bf16.mxu0 0
    %750 = vmatpush1.bf16.msra.mxu0 %v737
    %751 = vmatprep.subr.bf16.mxu0 0
    %752 = vmatpush1.bf16.msra.mxu0 %v738
    %753 = vmatprep.subr.bf16.mxu0 0
    %754 = vmatpush1.bf16.msra.mxu0 %v739
    %755 = vmatprep.subr.bf16.mxu0 0
    %756 = vmatpush1.bf16.msra.mxu0 0
    %757 = vmatprep.subr.bf16.mxu0 0
    %758 = vmatpush1.bf16.msra.mxu0 0
    %759 = vmatprep.subr.bf16.mxu0 0
    %760 = vmatpush1.bf16.msra.mxu0 0
    %761 = vmatprep.subr.bf16.mxu0 0
    %762 = vmatpush1.bf16.msra.mxu0 0
    %763 = vmatprep.subr.bf16.mxu0 0
    %764 = vmatpush1.bf16.msra.mxu0 0
    %765 = vmatprep.subr.bf16.mxu0 0
    %766 = vmatpush1.bf16.msra.mxu0 0
    %767 = vmatprep.subr.bf16.mxu0 0
    %768 = vmatpush1.bf16.msra.mxu0 0
    %769 = vmatprep.subr.bf16.mxu0 0
    %770 = vmatpush1.bf16.msra.mxu0 0
    %771 = vmatprep.subr.bf16.mxu0 0
    %772 = vmatpush1.bf16.msra.mxu0 0
    %773 = vmatprep.subr.bf16.mxu0 0
    %774 = vmatpush1.bf16.msra.mxu0 0
    %775 = vmatprep.subr.bf16.mxu0 0
    %776 = vmatpush1.bf16.msra.mxu0 0
    %777 = vmatprep.subr.bf16.mxu0 0
    %778 = vmatpush1.bf16.msra.mxu0 0
    %779 = vmatprep.mubr.bf16.mxu0 0
    %780 = vmatmul.mubr.bf16.gmra.mrb[0].mxu0 %v745
    %v781 = vpop.f32.mrb[0].mxu0
    %v782 = vadd.f32 %v714, %v781
    %v783 = vpop.f32.mrb[0].mxu0
    %v784 = vpop.f32.mrb[0].mxu0
    %v785 = vadd.f32 %v717, %v784
    %v786 = vpop.f32.mrb[0].mxu0
    %787 = vdwg.mxu0
    %v788 = vadd.f32 %v782, %v125
    %v789 = vadd.f32 %v785, %v126
    %v790 = vld [vmem:[%s5] sm:$0x1]
    %v792 = vlaneseq
    %v793 = vshrl.u32 %v792, 7
    %v794 = vsub.s32 0, %v793
    %v795 = vrot.slane %v790, %v794
    %v797 = vmul.f32 %v788, %v795
    %v798 = vmul.f32 %v789, %v795
    %v799 = vld [vmem:[%s6] sm:$0x1]
    %v801 = vlaneseq
    %v802 = vshrl.u32 %v801, 7
    %v803 = vsub.s32 0, %v802
    %v804 = vrot.slane %v799, %v803
    %v806 = vadd.f32 %v797, %v804
    %v807 = vadd.f32 %v798, %v804
    %v808 = vpack.c.bf16 %v807, %v806
    %v809 = vld [vmem:[#allocation10] sm:$0xf]
    %v810 = vld [vmem:[#allocation10 + $0x4] sm:$0xf]
    %v811 = vld [vmem:[#allocation10 + $0x8] sm:$0xf]
    %v812 = vld [vmem:[#allocation10 + $0xc] sm:$0xf]
    %v813 = vld [vmem:[#allocation10 + $0x10] sm:$0xf]
    %v814 = vld [vmem:[#allocation10 + $0x14] sm:$0xf]
    %v815 = vld [vmem:[#allocation10 + $0x18] sm:$0xf]
    %v816 = vld [vmem:[#allocation10 + $0x1c] sm:$0xf]
    %v817 = vld [vmem:[#allocation10 + $0x20] sm:$0xf]
    %v818 = vld [vmem:[#allocation10 + $0x24] sm:$0xf]
    %v819 = vld [vmem:[#allocation10 + $0x28] sm:$0xf]
    %v820 = vld [vmem:[#allocation10 + $0x2c] sm:$0xf]
    %v821 = vld [vmem:[#allocation10 + $0x30] sm:$0xf]
    %v822 = vld [vmem:[#allocation10 + $0x34] sm:$0xf]
    %v823 = vld [vmem:[#allocation10 + $0x38] sm:$0xf]
    %v824 = vld [vmem:[#allocation10 + $0x3c] sm:$0xf]
    %v825 = vld [vmem:[%s8] sm:$0x1]
    %v827 = vlaneseq
    %v828 = vshrl.u32 %v827, 7
    %v829 = vsub.s32 0, %v828
    %v830 = vrot.slane %v825, %v829
    %v848 = vunpack.c.l.b16 %v809
    %v849 = vunpack.c.l.b16 %v810
    %v850 = vunpack.c.l.b16 %v811
    %v851 = vunpack.c.l.b16 %v812
    %v852 = vunpack.c.l.b16 %v813
    %v853 = vunpack.c.l.b16 %v814
    %v854 = vunpack.c.l.b16 %v815
    %v855 = vunpack.c.l.b16 %v816
    %v856 = vunpack.c.l.b16 %v817
    %v857 = vunpack.c.l.b16 %v818
    %v858 = vunpack.c.l.b16 %v819
    %v859 = vunpack.c.l.b16 %v820
    %v860 = vunpack.c.l.b16 %v821
    %v861 = vunpack.c.l.b16 %v822
    %v862 = vunpack.c.l.b16 %v823
    %v863 = vunpack.c.l.b16 %v824
    %v864 = vpack.c.b16 %v849, %v848
    %v865 = vpack.c.b16 %v851, %v850
    %v866 = vpack.c.b16 %v853, %v852
    %v867 = vpack.c.b16 %v855, %v854
    %v868 = vpack.c.b16 %v857, %v856
    %v869 = vpack.c.b16 %v859, %v858
    %v870 = vpack.c.b16 %v861, %v860
    %v871 = vpack.c.b16 %v863, %v862
    %880 = vmatprep.subr.bf16.mxu0 0
    %881 = vmatpush1.bf16.msra.mxu0 %v864
    %882 = vmatprep.subr.bf16.mxu0 0
    %883 = vmatpush1.bf16.msra.mxu0 %v865
    %884 = vmatprep.subr.bf16.mxu0 0
    %885 = vmatpush1.bf16.msra.mxu0 %v866
    %886 = vmatprep.subr.bf16.mxu0 0
    %887 = vmatpush1.bf16.msra.mxu0 %v867
    %888 = vmatprep.subr.bf16.mxu0 0
    %889 = vmatpush1.bf16.msra.mxu0 %v868
    %890 = vmatprep.subr.bf16.mxu0 0
    %891 = vmatpush1.bf16.msra.mxu0 %v869
    %892 = vmatprep.subr.bf16.mxu0 0
    %893 = vmatpush1.bf16.msra.mxu0 %v870
    %894 = vmatprep.subr.bf16.mxu0 0
    %895 = vmatpush1.bf16.msra.mxu0 %v871
    %896 = vmatprep.subr.bf16.mxu0 0
    %897 = vmatpush1.bf16.msra.mxu0 0
    %898 = vmatprep.subr.bf16.mxu0 0
    %899 = vmatpush1.bf16.msra.mxu0 0
    %900 = vmatprep.subr.bf16.mxu0 0
    %901 = vmatpush1.bf16.msra.mxu0 0
    %902 = vmatprep.subr.bf16.mxu0 0
    %903 = vmatpush1.bf16.msra.mxu0 0
    %904 = vmatprep.subr.bf16.mxu0 0
    %905 = vmatpush1.bf16.msra.mxu0 0
    %906 = vmatprep.subr.bf16.mxu0 0
    %907 = vmatpush1.bf16.msra.mxu0 0
    %908 = vmatprep.subr.bf16.mxu0 0
    %909 = vmatpush1.bf16.msra.mxu0 0
    %910 = vmatprep.subr.bf16.mxu0 0
    %911 = vmatpush1.bf16.msra.mxu0 0
    %912 = vmatprep.mubr.bf16.mxu0 0
    %913 = vmatmul.mubr.bf16.gmra.mrb[0].mxu0 %v808
    %v914 = vpop.f32.mrb[0].mxu0
    %v915 = vadd.f32 %v830, %v914
    %v916 = vpop.f32.mrb[0].mxu0
    %v917 = vpop.f32.mrb[0].mxu0
    %v918 = vadd.f32 %v830, %v917
    %v919 = vpop.f32.mrb[0].mxu0
    %920 = vdwg.mxu0
    %v921 = vmax.f32 %v915, 0.0
    %v922 = vmax.f32 %v918, 0.0
    %v923 = vpack.c.bf16 %v922, %v921
    %v924 = vld [vmem:[#allocation11] sm:$0xf]
    %v925 = vld [vmem:[#allocation11 + $0x4] sm:$0xf]
    %v926 = vld [vmem:[#allocation11 + $0x8] sm:$0xf]
    %v927 = vld [vmem:[#allocation11 + $0xc] sm:$0xf]
    %v928 = vld [vmem:[#allocation11 + $0x10] sm:$0xf]
    %v929 = vld [vmem:[#allocation11 + $0x14] sm:$0xf]
    %v930 = vld [vmem:[#allocation11 + $0x18] sm:$0xf]
    %v931 = vld [vmem:[#allocation11 + $0x1c] sm:$0xf]
    %v932 = vld [vmem:[#allocation11 + $0x20] sm:$0xf]
    %v933 = vld [vmem:[#allocation11 + $0x24] sm:$0xf]
    %v934 = vld [vmem:[#allocation11 + $0x28] sm:$0xf]
    %v935 = vld [vmem:[#allocation11 + $0x2c] sm:$0xf]
    %v936 = vld [vmem:[#allocation11 + $0x30] sm:$0xf]
    %v937 = vld [vmem:[#allocation11 + $0x34] sm:$0xf]
    %v938 = vld [vmem:[#allocation11 + $0x38] sm:$0xf]
    %v939 = vld [vmem:[#allocation11 + $0x3c] sm:$0xf]
    %v956 = vunpack.c.l.b16 %v924
    %v957 = vunpack.c.l.b16 %v925
    %v958 = vunpack.c.l.b16 %v926
    %v959 = vunpack.c.l.b16 %v927
    %v960 = vunpack.c.l.b16 %v928
    %v961 = vunpack.c.l.b16 %v929
    %v962 = vunpack.c.l.b16 %v930
    %v963 = vunpack.c.l.b16 %v931
    %v964 = vunpack.c.l.b16 %v932
    %v965 = vunpack.c.l.b16 %v933
    %v966 = vunpack.c.l.b16 %v934
    %v967 = vunpack.c.l.b16 %v935
    %v968 = vunpack.c.l.b16 %v936
    %v969 = vunpack.c.l.b16 %v937
    %v970 = vunpack.c.l.b16 %v938
    %v971 = vunpack.c.l.b16 %v939
    %v972 = vpack.c.b16 %v957, %v956
    %v973 = vpack.c.b16 %v959, %v958
    %v974 = vpack.c.b16 %v961, %v960
    %v975 = vpack.c.b16 %v963, %v962
    %v976 = vpack.c.b16 %v965, %v964
    %v977 = vpack.c.b16 %v967, %v966
    %v978 = vpack.c.b16 %v969, %v968
    %v979 = vpack.c.b16 %v971, %v970
    %988 = vmatprep.subr.bf16.mxu0 0
    %989 = vmatpush1.bf16.msra.mxu0 %v972
    %990 = vmatprep.subr.bf16.mxu0 0
    %991 = vmatpush1.bf16.msra.mxu0 %v973
    %992 = vmatprep.subr.bf16.mxu0 0
    %993 = vmatpush1.bf16.msra.mxu0 %v974
    %994 = vmatprep.subr.bf16.mxu0 0
    %995 = vmatpush1.bf16.msra.mxu0 %v975
    %996 = vmatprep.subr.bf16.mxu0 0
    %997 = vmatpush1.bf16.msra.mxu0 %v976
    %998 = vmatprep.subr.bf16.mxu0 0
    %999 = vmatpush1.bf16.msra.mxu0 %v977
    %1000 = vmatprep.subr.bf16.mxu0 0
    %1001 = vmatpush1.bf16.msra.mxu0 %v978
    %1002 = vmatprep.subr.bf16.mxu0 0
    %1003 = vmatpush1.bf16.msra.mxu0 %v979
    %1004 = vmatprep.subr.bf16.mxu0 0
    %1005 = vmatpush1.bf16.msra.mxu0 0
    %1006 = vmatprep.subr.bf16.mxu0 0
    %1007 = vmatpush1.bf16.msra.mxu0 0
    %1008 = vmatprep.subr.bf16.mxu0 0
    %1009 = vmatpush1.bf16.msra.mxu0 0
    %1010 = vmatprep.subr.bf16.mxu0 0
    %1011 = vmatpush1.bf16.msra.mxu0 0
    %1012 = vmatprep.subr.bf16.mxu0 0
    %1013 = vmatpush1.bf16.msra.mxu0 0
    %1014 = vmatprep.subr.bf16.mxu0 0
    %1015 = vmatpush1.bf16.msra.mxu0 0
    %1016 = vmatprep.subr.bf16.mxu0 0
    %1017 = vmatpush1.bf16.msra.mxu0 0
    %1018 = vmatprep.subr.bf16.mxu0 0
    %1019 = vmatpush1.bf16.msra.mxu0 0
    %1020 = vmatprep.mubr.bf16.mxu0 0
    %1021 = vmatmul.mubr.bf16.gmra.mrb[0].mxu0 %v923
    %v1022 = vpop.f32.mrb[0].mxu0
    %v1023 = vadd.f32 0.0, %v1022
    %v1024 = vpop.f32.mrb[0].mxu0
    %v1025 = vpop.f32.mrb[0].mxu0
    %v1026 = vadd.f32 0.0, %v1025
    %v1027 = vpop.f32.mrb[0].mxu0
    %1028 = vdwg.mxu0
    %v1029 = vadd.f32 %v806, %v1023
    %v1030 = vadd.f32 %v807, %v1026
    %v1031 = vld [vmem:[%s10] sm:$0x1]
    %v1033 = vlaneseq
    %v1034 = vshrl.u32 %v1033, 7
    %v1035 = vsub.s32 0, %v1034
    %v1036 = vrot.slane %v1031, %v1035
    %v1038 = vmul.f32 %v1029, %v1036
    %v1039 = vmul.f32 %v1030, %v1036
    %v1040 = vld [vmem:[%s11] sm:$0x1]
    %v1042 = vlaneseq
    %v1043 = vshrl.u32 %v1042, 7
    %v1044 = vsub.s32 0, %v1043
    %v1045 = vrot.slane %v1040, %v1044
    %v1047 = vadd.f32 %v1038, %v1045
    %v1048 = vadd.f32 %v1039, %v1045
    %1049 = vst [vmem:[#allocation13] sm:$0xff] %v1047
    %1050 = vst [vmem:[#allocation13 + $0x8] sm:$0xff] %v1048
    // Predicated region
    $region74: #{tpu_custom_call.1} parent=1 // pred_check
      _
    $region75: #{tpu_custom_call.1} parent=1 // pred_check_branch
      %1052 = sbr.rel (0) target = $region77
    $region76: #{tpu_custom_call.1} parent=1 // pred_region
      %s1054 = ssub.s32 256, 256
      %1055 = vsyncadd [#allocation4], %s1054
      %s1056 = sshll.u32 [#allocation13], 4
      %s1057 = int_to_ptr.vmem [resolvable:$true] %s1056
      %1062 = dma.vmem_to_hbm [thread:$0]  %s1057, 256, %s12, [#allocation4], 128, 128, 8
    $region77: #{tpu_custom_call.1} parent=1 // pred_fallthru
      _
    // Predicated region
    $region78: #{tpu_custom_call.1} parent=1 // pred_check
      _
    $region79: #{tpu_custom_call.1} parent=1 // pred_check_branch
      %1064 = sbr.rel (0) target = $region81
    $region80: #{tpu_custom_call.1} parent=1 // pred_region
      %1065 = dma.done [#allocation4], 256
    $region81: #{tpu_custom_call.1} parent=1 // pred_fallthru
      _
    %1066 = vsyncpa [#allocation3], 1
    %1067 = vsyncpa [#allocation6], 1
    %1068 = vsyncpa [#allocation9], 1
    %1069 = vsyncpa [#allocation12], 1
    %1070 = vsyncpa [#allocation4], 1

</llo_original>
